<compile_context>
chip_gen: v5e
topology: v5e:2x2
jax: 0.10.0
libtpu: 0.0.40
codegen_flags: <defaults>
</compile_context>

<pallas_src>
import jax
import jax.numpy as jnp
from jax.experimental import pallas as pl
from jax.experimental.pallas import tpu as pltpu

_LANE = 128
_TILE_R = 1024  # rows per feature tile: (1024,128) f32 block = 512 KiB per buffer


# ---------------------------------------------------------------------------
# Kernels
# ---------------------------------------------------------------------------
def _exp_half_kernel(logvar_ref, scale_ref):
    # scale = exp(0.5 * logvar); compute in f32 (v5e EUP has no bf16 path).
    scale_ref[...] = jnp.exp(
        0.5 * logvar_ref[...].astype(jnp.float32)
    ).astype(scale_ref.dtype)


def _fused_scale_kernel(logvar_ref, prior_ref, out_ref, scale_vmem):
    # exp(0.5*logvar) is computed only when the feature tile changes (batch
    # index == 0) and cached in VMEM scratch in the output dtype; the exp goes
    # to the otherwise-idle EUP slot and is amortized over the batch sweep.
    @pl.when(pl.program_id(1) == 0)
    def _():
        scale_vmem[...] = jnp.exp(
            0.5 * logvar_ref[...].astype(jnp.float32)
        ).astype(scale_vmem.dtype)

    # Native-dtype minimum (no f32 round-trip); the cast is a no-op when the
    # prior already has the output dtype.
    out_ref[...] = jnp.minimum(
        scale_vmem[...], prior_ref[...].astype(out_ref.dtype)
    )


# ---------------------------------------------------------------------------
# Helpers
# ---------------------------------------------------------------------------
def _feature_tiling(r):
    """Pick (tile_r, grid_r) for r lane-rows: full extent if small, else fixed
    large tiles with a Pallas-masked ragged last block."""
    if r <= _TILE_R:
        return r, 1
    return _TILE_R, pl.cdiv(r, _TILE_R)


def _exp_half_scale_param(logvar):
    """exp(0.5*logvar) on the feature-shaped parameter (prior=None path)."""
    feat_shape = logvar.shape
    n = logvar.size
    if n % _LANE == 0:
        r = n // _LANE
        tile_r, grid_r = _feature_tiling(r)
        lv2d = logvar.reshape(r, _LANE)
        blk = (tile_r, _LANE)
    else:
        # Rare ragged feature size: one full-extent block (param-sized, one-shot).
        grid_r = 1
        lv2d = logvar.reshape(1, n)
        blk = (1, n)

    out = pl.pallas_call(
        _exp_half_kernel,
        out_shape=jax.ShapeDtypeStruct(lv2d.shape, logvar.dtype),
        grid_spec=pltpu.PrefetchScalarGridSpec(
            num_scalar_prefetch=0,
            grid=(grid_r,),
            in_specs=[pl.BlockSpec(blk, lambda i: (i, 0))],
            out_specs=pl.BlockSpec(blk, lambda i: (i, 0)),
        ),
        compiler_params=pltpu.CompilerParams(dimension_semantics=("arbitrary",)),
        cost_estimate=pl.CostEstimate(
            flops=n,
            transcendentals=n,
            bytes_accessed=2 * n * logvar.dtype.itemsize,
        ),
    )(lv2d)
    return out.reshape(feat_shape)


# ---------------------------------------------------------------------------
# Public wrapper
# ---------------------------------------------------------------------------
def tensor2normal_glob_diag_cov(loc, logvar, prior_scale=None):
    """Returns (mean, scale) of Normal(loc, min(exp(0.5*logvar), prior_scale)).

    loc:         (B, C, H, W)  NCHW
    logvar:      (C, H, W)     global trainable parameter
    prior_scale: (B, C, H, W)  optional
    """
    B = loc.shape[0]
    feat_shape = loc.shape[1:]
    assert logvar.shape == feat_shape

    n = 1
    for d in feat_shape:
        n *= d

    if prior_scale is None:
        # mean is loc itself (identity); scale is a broadcast of the feature-
        # shaped result.  The broadcast stays lazy when this function is
        # inlined under a larger jit; at a jit/op boundary XLA materializes it.
        scale_feat = _exp_half_scale_param(logvar)
        return loc, jnp.broadcast_to(scale_feat[None], loc.shape)

    assert prior_scale.shape == loc.shape
    out_dtype = jnp.promote_types(logvar.dtype, prior_scale.dtype)

    if n % _LANE == 0:
        # Fast path (common C*H*W): pure reshapes, no pad, no output slice.
        n_pad = n
        r = n // _LANE
        prior_3d = prior_scale.reshape(B, r, _LANE)
        logvar_3d = logvar.reshape(1, r, _LANE)
    else:
        # TODO(synk): ragged feature sizes still pay one XLA pad + one slice.
        n_pad = pl.cdiv(n, _LANE) * _LANE
        r = n_pad // _LANE
        prior_3d = jnp.pad(
            prior_scale.reshape(B, n), ((0, 0), (0, n_pad - n))
        ).reshape(B, r, _LANE)
        logvar_3d = jnp.pad(
            logvar.reshape(1, n), ((0, 0), (0, n_pad - n))
        ).reshape(1, r, _LANE)

    tile_r, grid_r = _feature_tiling(r)

    bytes_acc = (
        n_pad * logvar.dtype.itemsize                  # logvar: read once per feature tile
        + B * n_pad * prior_scale.dtype.itemsize       # prior stream
        + B * n_pad * jnp.dtype(out_dtype).itemsize    # output stream
    )

    scale_3d = pl.pallas_call(
        _fused_scale_kernel,
        out_shape=jax.ShapeDtypeStruct((B, r, _LANE), out_dtype),
        grid_spec=pltpu.PrefetchScalarGridSpec(
            num_scalar_prefetch=0,
            # Feature axis OUTER, batch INNER: logvar block index is constant
            # across the batch sweep -> DMA'd once per feature tile.
            grid=(grid_r, B),
            in_specs=[
                pl.BlockSpec((1, tile_r, _LANE), lambda j, b: (0, j, 0)),
                pl.BlockSpec((1, tile_r, _LANE), lambda j, b: (b, j, 0)),
            ],
            out_specs=pl.BlockSpec((1, tile_r, _LANE), lambda j, b: (b, j, 0)),
            scratch_shapes=[pltpu.VMEM((1, tile_r, _LANE), out_dtype)],
        ),
        compiler_params=pltpu.CompilerParams(
            # Feature axis "parallel" (megacore split on v7x keeps both TCs
            # busy even when B is tiny); batch axis must be "arbitrary" so the
            # per-feature-tile scratch init at b == 0 is valid.
            dimension_semantics=("parallel", "arbitrary"),
        ),
        cost_estimate=pl.CostEstimate(
            flops=B * n_pad + n_pad,
            transcendentals=n_pad,
            bytes_accessed=bytes_acc,
        ),
    )(logvar_3d, prior_3d)

    if n % _LANE == 0:
        scale = scale_3d.reshape(loc.shape)
    else:
        scale = scale_3d.reshape(B, n_pad)[:, :n].reshape(loc.shape)

    # mean is loc unchanged (Normal's broadcast is a no-op for loc).
    return loc, scale


# ---------------------------------------------------------------------------
# Self-test
# ---------------------------------------------------------------------------
if __name__ == "__main__":
    key = jax.random.PRNGKey(0)
    B, C, H, W = 2, 4, 16, 16

    k_loc, k_prior, k_lv = jax.random.split(key, 3)
    loc = jax.random.normal(k_loc, (B, C, H, W), dtype=jnp.float32)

    # Parameter init exactly as in the PyTorch module: logvar = zeros(shape)
    logvar = jnp.zeros((C, H, W), dtype=jnp.float32)

    # --- prior=None path (fast path, C*H*W % 128 == 0) ---
    mean, scale = tensor2normal_glob_diag_cov(loc, logvar)
    mean, scale = jax.block_until_ready((mean, scale))
    assert jnp.allclose(mean, loc)
    assert jnp.allclose(scale, jnp.exp(0.5 * logvar)[None])           # == 1.0

    # --- prior path with a non-trivial (trained) logvar (fast path) ---
    logvar_t = 0.3 * jax.random.normal(k_lv, (C, H, W), dtype=jnp.float32)
    prior_scale = (
        jnp.abs(jax.random.normal(k_prior, (B, C, H, W), jnp.float32)) + 0.1
    )
    mean_p, scale_p = tensor2normal_glob_diag_cov(loc, logvar_t, prior_scale)
    mean_p, scale_p = jax.block_until_ready((mean_p, scale_p))
    ref_scale = jnp.minimum(jnp.exp(0.5 * logvar_t)[None], prior_scale)
    assert jnp.allclose(mean_p, loc)
    assert jnp.allclose(scale_p, ref_scale, atol=1e-6, rtol=1e-6)

    # --- ragged feature-size fallback path (C*H*W % 128 != 0) ---
    Cr, Hr, Wr = 3, 5, 7
    kr_loc, kr_prior, kr_lv = jax.random.split(jax.random.PRNGKey(1), 3)
    loc_r = jax.random.normal(kr_loc, (B, Cr, Hr, Wr), dtype=jnp.float32)
    logvar_r = 0.2 * jax.random.normal(kr_lv, (Cr, Hr, Wr), dtype=jnp.float32)
    prior_r = (
        jnp.abs(jax.random.normal(kr_prior, (B, Cr, Hr, Wr), jnp.float32)) + 0.1
    )
    mean_r, scale_r = tensor2normal_glob_diag_cov(loc_r, logvar_r, prior_r)
    mean_r, scale_r = jax.block_until_ready((mean_r, scale_r))
    assert jnp.allclose(mean_r, loc_r)
    assert jnp.allclose(
        scale_r, jnp.minimum(jnp.exp(0.5 * logvar_r)[None], prior_r),
        atol=1e-6, rtol=1e-6,
    )
    mean_rn, scale_rn = tensor2normal_glob_diag_cov(loc_r, logvar_r)
    mean_rn, scale_rn = jax.block_until_ready((mean_rn, scale_rn))
    assert jnp.allclose(scale_rn, jnp.exp(0.5 * logvar_r)[None], atol=1e-6)

    print("KERNEL_OK")
</pallas_src>

<mosaic_0001>
module attributes {stable_mosaic.version = 11 : i64} {
  func.func @_exp_half_kernel(%arg0: i32, %arg1: memref<8x128xf32, #tpu.memory_space<vmem>>, %arg2: memref<8x128xf32, #tpu.memory_space<vmem>>) attributes {dimension_semantics = [#tpu.dimension_semantics<arbitrary>], iteration_bounds = array<i64: 1>, scalar_prefetch = 0 : i64, scratch_operands = 0 : i64, tpu.core_type = #tpu.core_type<tc>, window_params = [{transform_indices = @transform_0, window_bounds = array<i64: 8, 128>}, {transform_indices = @transform_1, window_bounds = array<i64: 8, 128>}]} {
    %c0 = arith.constant 0 : index
    %c0_0 = arith.constant 0 : index
    %0 = vector.load %arg1[%c0, %c0_0] : memref<8x128xf32, #tpu.memory_space<vmem>>, vector<8x128xf32>
    %cst = arith.constant 5.000000e-01 : f32
    %1 = vector.broadcast %cst : f32 to vector<8x128xf32>
    %2 = arith.mulf %1, %0 : vector<8x128xf32>
    %3 = math.exp %2 : vector<8x128xf32>
    %c0_1 = arith.constant 0 : index
    %c0_2 = arith.constant 0 : index
    %4 = vector.load %arg2[%c0_1, %c0_2] : memref<8x128xf32, #tpu.memory_space<vmem>>, vector<8x128xf32>
    tpu.vector_store %arg2[%c0_1, %c0_2], %3 {strides = array<i32>} : memref<8x128xf32, #tpu.memory_space<vmem>>, vector<8x128xf32>,
    return
  }
  func.func @transform_0(%arg0: i32) -> (i32, i32) {
    %c0_i32 = arith.constant 0 : i32
    %c0_i32_0 = arith.constant 0 : i32
    return %arg0, %c0_i32 : i32, i32
  }
  func.func @transform_1(%arg0: i32) -> (i32, i32) {
    %c0_i32 = arith.constant 0 : i32
    %c0_i32_0 = arith.constant 0 : i32
    return %arg0, %c0_i32 : i32, i32
  }
}

</mosaic_0001>

<llo_original>
// kernel: tpu_custom_call.1
$region0: #{tpu_custom_call.1}
  #allocation0 [shape = 'u32[]', space=smem, size = 0x4, offset = 0x4, fixed_abs, tag = 'smem constant byte address 0x4 - core index']
  #allocation1 [shape = 'u32[72,128]{1,0:T(1,128)}', space=vmem, size = 0x9000, scoped, tag = 'internal scratch']
  %s0 = inlined_call_operand.hbm [shape: f32[8,128], index: 0, kind: input, shape index: {}]
  %s1 = inlined_call_operand.hbm [shape: f32[8,128], index: 1, kind: output, shape index: {}]
  %s2 = sld [smem:[#allocation0]]
  $region18: #{tpu_custom_call.1} parent=0
    _
  %s4 = ssub.s32 1, %s2
  %s5 = scalar_select 0, %s4, %s2
  $region1: #{tpu_custom_call.1} parent=0
    #allocation2 [shape = 'u8[4096]{0}', space=vmem, size = 0x1000, scoped, tag = 'input window, operand 0, single buffered']
    #allocation3 [shape = 's32[1]{0}', space=sflag, size = 0x4, scoped, tag = 'scoped memory for tpu_custom_call.1']
    #allocation4 [shape = 's32[1]{0}', space=sflag, size = 0x4, scoped, tag = 'scoped memory for tpu_custom_call.1']
    #allocation5 [shape = 'u8[4096]{0}', space=vmem, size = 0x1000, scoped, tag = 'output window, operand 0, single buffered']
    %6 = vsyncpa [#allocation3], 0
    %7 = vsyncpa [#allocation4], 0
    // Predicated region
    $region2: #{tpu_custom_call.1} parent=1 // pred_check
      _
    $region3: #{tpu_custom_call.1} parent=1 // pred_check_branch
      %9 = sbr.rel (0) target = $region5
    $region4: #{tpu_custom_call.1} parent=1 // pred_region
      %11 = vsyncadd [#allocation3], 0
      %s13 = sshll.u32 %s0, 4
      %s14 = int_to_ptr.hbm [resolvable:$true] %s13
      %s15 = sshll.u32 [#allocation2], 4
      %s16 = int_to_ptr.vmem [resolvable:$true] %s15
      %18 = dma.hbm_to_vmem [thread:$0]  %s14, 128, %s16, [#allocation3]
    $region5: #{tpu_custom_call.1} parent=1 // pred_fallthru
      _
    // Predicated region
    $region6: #{tpu_custom_call.1} parent=1 // pred_check
      _
    $region7: #{tpu_custom_call.1} parent=1 // pred_check_branch
      %20 = sbr.rel (0) target = $region9
    $region8: #{tpu_custom_call.1} parent=1 // pred_region
      %22 = dma.done [#allocation3], 128
    $region9: #{tpu_custom_call.1} parent=1 // pred_fallthru
      _
    %v23 = vld [vmem:[#allocation2] sm:$0xff]
    %v24 = vmul.f32 %v23, 0.5
    %v25 = vmul.f32 %v24, 1.442695
    %v26 = vpow.pop %v25
    %27 = vst [vmem:[#allocation5] sm:$0xff] %v26
    // Predicated region
    $region10: #{tpu_custom_call.1} parent=1 // pred_check
      _
    $region11: #{tpu_custom_call.1} parent=1 // pred_check_branch
      %29 = sbr.rel (0) target = $region13
    $region12: #{tpu_custom_call.1} parent=1 // pred_region
      %31 = vsyncadd [#allocation4], 0
      %s33 = sshll.u32 [#allocation5], 4
      %s34 = int_to_ptr.vmem [resolvable:$true] %s33
      %s35 = sshll.u32 %s1, 4
      %s36 = int_to_ptr.hbm [resolvable:$true] %s35
      %38 = dma.vmem_to_hbm [thread:$0]  %s34, 128, %s36, [#allocation4]
    $region13: #{tpu_custom_call.1} parent=1 // pred_fallthru
      _
    // Predicated region
    $region14: #{tpu_custom_call.1} parent=1 // pred_check
      _
    $region15: #{tpu_custom_call.1} parent=1 // pred_check_branch
      %40 = sbr.rel (0) target = $region17
    $region16: #{tpu_custom_call.1} parent=1 // pred_region
      %42 = dma.done [#allocation4], 128
    $region17: #{tpu_custom_call.1} parent=1 // pred_fallthru
      _
    %43 = vsyncpa [#allocation3], 1
    %44 = vsyncpa [#allocation4], 1

</llo_original>
